<compile_context>
chip_gen: v7x
topology: tpu7x:2x2x1
jax: 0.10.0
libtpu: 0.0.40
codegen_flags: <defaults>
</compile_context>

<pallas_src>
import math

import jax
import jax.numpy as jnp
from jax.experimental import pallas as pl
from jax.experimental.pallas import tpu as pltpu

# ------------------------- model hyper-parameters -------------------------
NUM_NEURON = 32          # hidden width N
NUM_HIDDEN_LAYERS = 4    # -> (NUM_HIDDEN_LAYERS - 1) = 3 hidden nn.Linear layers
W_0 = 10.0
BATCH = 8

N_HIDDEN = max(NUM_HIDDEN_LAYERS - 1, 0)
# mode='constant' => fan_in is NUM_NEURON for every hidden layer
_SCALE = math.pi / (2 ** math.floor(math.log2(NUM_NEURON)))

PACK = 4                       # batch rows packed per 128-lane vector row
LANES = PACK * NUM_NEURON      # 128


def _round_up(n, m):
    return ((n + m - 1) // m) * m


def _binarize(x, thresh):
    """where(x > t, 1, where(x < -t, -1, 0)) as 2 compares + 1 subtract."""
    t = jnp.float32(thresh)
    return (x > t).astype(jnp.float32) - (x < -t).astype(jnp.float32)


def _binarize_act(x):
    return _binarize(x, 0.01)


# ------------------------------ kernel ------------------------------------
def _make_kernel(n_hidden):
    def kernel(x_ref, w1_ref, wh_ref, s_ref, o_ref):
        # First layer (in_features == 1): tiny K=4 matmul against the
        # block-diagonal replication of the binarized (1, N) weight row.
        out = jnp.dot(x_ref[...], w1_ref[...],
                      preferred_element_type=jnp.float32)            # (TILE_R, 128)
        out = _binarize_act(jnp.sin(W_0 * out + 0.1))

        # Hidden layers: static unroll (small compile-time constant).
        # Weights are pre-binarized, pre-scaled, pre-transposed, lane-replicated.
        for i in range(n_hidden):
            acc = jnp.dot(out, wh_ref[i],
                          preferred_element_type=jnp.float32)        # (TILE_R, 128)
            out = _binarize_act(jnp.sin(acc + 0.1))

        # y_pred: per-batch-row sum over the 32 neurons of each lane group,
        # expressed as a matmul against a (128, 4) group-sum selector.
        o_ref[...] = jnp.dot(out, s_ref[...],
                             preferred_element_type=jnp.float32)     # (TILE_R, 4)
    return kernel


# ------------------------------ wrapper ------------------------------------
def prepare_params(w_in, w_hidden):
    """Hoist weight binarize / scale / transpose / lane replication out of the kernel.

    w_in: (N, 1), w_hidden: (H, N, N)
      -> w_first (4, 128), w_hid (H, 128, 128), s_sum (128, 4)
    """
    eye = jnp.eye(PACK, dtype=jnp.float32)
    w0_b = _binarize(w_in.reshape(1, NUM_NEURON), 1e-6)               # (1, N)
    w_first = jnp.kron(eye, w0_b)                                     # (4, 128)
    # F.linear(out, scale*W_b) == out @ (scale * W_b).T ; transpose + scale here.
    wt = _SCALE * jnp.swapaxes(_binarize(w_hidden, 1e-6), 1, 2)       # (H, N, N)
    w_hid = jax.vmap(lambda w: jnp.kron(eye, w))(wt)                  # (H, 128, 128)
    s_sum = jnp.kron(eye, jnp.ones((NUM_NEURON, 1), jnp.float32))     # (128, 4)
    return w_first, w_hid, s_sum


def binarized_sin_forward(x, params, *, tile_rows=256):
    """x: (B, 1) -> (B, 1). tile_rows rows of the packed layout == 4*tile_rows batch rows."""
    w_first, w_hid, s_sum = params
    n_hidden = int(w_hid.shape[0])
    B = x.shape[0]

    R = -(-B // PACK)                                   # packed rows needed
    tile_r = min(_round_up(max(tile_rows, 8), 8), _round_up(R, 8))
    R_pad = _round_up(R, tile_r)
    B_pad = R_pad * PACK

    x_pad = jnp.zeros((B_pad, 1), jnp.float32).at[:B].set(x.astype(jnp.float32))
    x_packed = x_pad.reshape(R_pad, PACK)               # row r holds batch rows 4r..4r+3

    # Placeholder so the BlockSpec stays valid when there are no hidden layers.
    wh = w_hid if n_hidden > 0 else jnp.zeros((1, LANES, LANES), jnp.float32)
    h_blk = wh.shape[0]

    cost = pl.CostEstimate(
        flops=2 * R_pad * (PACK * LANES + n_hidden * LANES * LANES + LANES * PACK),
        transcendentals=R_pad * LANES * (1 + n_hidden),
        bytes_accessed=4 * (2 * R_pad * PACK + PACK * LANES
                            + h_blk * LANES * LANES + LANES * PACK),
    )

    y_packed = pl.pallas_call(
        _make_kernel(n_hidden),
        out_shape=jax.ShapeDtypeStruct((R_pad, PACK), jnp.float32),
        grid=(R_pad // tile_r,),
        in_specs=[
            pl.BlockSpec((tile_r, PACK), lambda i: (i, 0)),            # x tile
            pl.BlockSpec((PACK, LANES), lambda i: (0, 0)),             # grid-invariant
            pl.BlockSpec((h_blk, LANES, LANES), lambda i: (0, 0, 0)),  # grid-invariant
            pl.BlockSpec((LANES, PACK), lambda i: (0, 0)),             # grid-invariant
        ],
        out_specs=pl.BlockSpec((tile_r, PACK), lambda i: (i, 0)),
        compiler_params=pltpu.CompilerParams(dimension_semantics=("parallel",)),
        cost_estimate=cost,
    )(x_packed, w_first, wh, s_sum)

    # TODO(synk): output block is (TILE_R, 4) (4/128 lanes); a fully lane-dense
    # store would need a cross-row repack that costs more than it saves here.
    return y_packed.reshape(B_pad, 1)[:B]


def binarized_sin_model(x, w_in, w_hidden, *, tile_rows=256):
    """x: (B, 1); w_in: (N, 1); w_hidden: (H, N, N) -> (B, 1)."""
    return binarized_sin_forward(x, prepare_params(w_in, w_hidden), tile_rows=tile_rows)


# ------------------------------ reference ----------------------------------
def _binarize_ref(x, thresh):
    return jnp.where(x > thresh, jnp.float32(1.0),
                     jnp.where(x < -thresh, jnp.float32(-1.0), jnp.float32(0.0)))


def _reference(x, w_in, w_hidden):
    """Pure-JAX reference mirroring the PyTorch forward."""
    out = x @ _binarize_ref(w_in, 1e-6).T
    out = jnp.sin(W_0 * out + 0.1)
    out = _binarize_ref(out, 0.01)
    for i in range(w_hidden.shape[0]):
        out = out @ (_SCALE * _binarize_ref(w_hidden[i], 1e-6)).T
        out = jnp.sin(out + 0.1)
        out = _binarize_ref(out, 0.01)
    return jnp.sum(out, axis=1, keepdims=True)


if __name__ == "__main__":
    key = jax.random.PRNGKey(0)
    k_x, k_w0, k_wh, k_x2 = jax.random.split(key, 4)

    # deterministic synthetic parameters (same distributions as the module init)
    w_in = jax.random.uniform(k_w0, (NUM_NEURON, 1),
                              minval=-1.0, maxval=1.0, dtype=jnp.float32)
    bound = math.sqrt(6.0 / NUM_NEURON)
    w_hidden = jax.random.uniform(
        k_wh, (N_HIDDEN, NUM_NEURON, NUM_NEURON),
        minval=-bound, maxval=bound, dtype=jnp.float32)

    # small-batch check (module-scale shapes)
    x = jax.random.uniform(k_x, (BATCH, 1),
                           minval=-1.0, maxval=1.0, dtype=jnp.float32)
    y = binarized_sin_model(x, w_in, w_hidden)
    jax.block_until_ready(y)
    y_ref = _reference(x, w_in, w_hidden)
    assert y.shape == (BATCH, 1)
    assert jnp.allclose(y, y_ref, atol=1e-4), (y, y_ref)

    # multi-tile grid + ragged-batch padding check (exercises the batched path)
    B2 = 1037
    x2 = jax.random.uniform(k_x2, (B2, 1),
                            minval=-1.0, maxval=1.0, dtype=jnp.float32)
    y2 = binarized_sin_model(x2, w_in, w_hidden, tile_rows=64)
    jax.block_until_ready(y2)
    y2_ref = _reference(x2, w_in, w_hidden)
    assert y2.shape == (B2, 1)
    assert jnp.allclose(y2, y2_ref, atol=1e-4)

    print("KERNEL_OK")
</pallas_src>

<mosaic_0001>
module attributes {stable_mosaic.version = 11 : i64} {
  func.func @kernel(%arg0: i32, %arg1: memref<8x4xf32, #tpu.memory_space<vmem>>, %arg2: memref<4x128xf32, #tpu.memory_space<vmem>>, %arg3: memref<3x128x128xf32, #tpu.memory_space<vmem>>, %arg4: memref<128x4xf32, #tpu.memory_space<vmem>>, %arg5: memref<8x4xf32, #tpu.memory_space<vmem>>) attributes {dimension_semantics = [#tpu.dimension_semantics<parallel>], iteration_bounds = array<i64: 1>, scalar_prefetch = 0 : i64, scratch_operands = 0 : i64, tpu.core_type = #tpu.core_type<tc>, window_params = [{transform_indices = @transform_0, window_bounds = array<i64: 8, 4>}, {pipeline_mode = #tpu.pipeline_mode<synchronous>, transform_indices = @transform_1, window_bounds = array<i64: 4, 128>}, {pipeline_mode = #tpu.pipeline_mode<synchronous>, transform_indices = @transform_2, window_bounds = array<i64: 3, 128, 128>}, {pipeline_mode = #tpu.pipeline_mode<synchronous>, transform_indices = @transform_3, window_bounds = array<i64: 128, 4>}, {transform_indices = @transform_4, window_bounds = array<i64: 8, 4>}]} {
    %c0 = arith.constant 0 : index
    %c0_0 = arith.constant 0 : index
    %0 = vector.load %arg1[%c0, %c0_0] : memref<8x4xf32, #tpu.memory_space<vmem>>, vector<8x4xf32>
    %c0_1 = arith.constant 0 : index
    %c0_2 = arith.constant 0 : index
    %1 = vector.load %arg2[%c0_1, %c0_2] : memref<4x128xf32, #tpu.memory_space<vmem>>, vector<4x128xf32>
    %cst = arith.constant dense<0.000000e+00> : vector<8x128xf32>
    %2 = tpu.matmul %0, %1, %cst {dimension_numbers = #tpu.dot_dimension_numbers<[1], [0], [0], [1], [0, 0, 1, 1], [], []>} : vector<8x4xf32>, vector<4x128xf32>, vector<8x128xf32> -> vector<8x128xf32>
    %cst_3 = arith.constant 1.000000e+01 : f32
    %3 = vector.broadcast %cst_3 : f32 to vector<8x128xf32>
    %4 = arith.mulf %3, %2 : vector<8x128xf32>
    %cst_4 = arith.constant 1.000000e-01 : f32
    %5 = vector.broadcast %cst_4 : f32 to vector<8x128xf32>
    %6 = arith.addf %4, %5 : vector<8x128xf32>
    %7 = math.sin %6 : vector<8x128xf32>
    %cst_5 = arith.constant 0.00999999977 : f32
    %8 = vector.broadcast %cst_5 : f32 to vector<8x128xf32>
    %9 = arith.cmpf ogt, %7, %8 : vector<8x128xf32>
    %10 = arith.extui %9 : vector<8x128xi1> to vector<8x128xi32>
    %11 = arith.sitofp %10 : vector<8x128xi32> to vector<8x128xf32>
    %cst_6 = arith.constant 0.000000e+00 : f32
    %cst_7 = arith.constant 0.00999999977 : f32
    %12 = arith.subf %cst_6, %cst_7 : f32
    %13 = vector.broadcast %12 : f32 to vector<8x128xf32>
    %14 = arith.cmpf olt, %7, %13 : vector<8x128xf32>
    %15 = arith.extui %14 : vector<8x128xi1> to vector<8x128xi32>
    %16 = arith.sitofp %15 : vector<8x128xi32> to vector<8x128xf32>
    %17 = arith.subf %11, %16 : vector<8x128xf32>
    %c0_8 = arith.constant 0 : index
    %c0_9 = arith.constant 0 : index
    %c0_10 = arith.constant 0 : index
    %18 = vector.load %arg3[%c0_8, %c0_9, %c0_10] : memref<3x128x128xf32, #tpu.memory_space<vmem>>, vector<1x128x128xf32>
    %19 = vector.shape_cast %18 : vector<1x128x128xf32> to vector<128x128xf32>
    %cst_11 = arith.constant dense<0.000000e+00> : vector<8x128xf32>
    %20 = tpu.matmul %17, %19, %cst_11 {dimension_numbers = #tpu.dot_dimension_numbers<[1], [0], [0], [1], [0, 0, 1, 1], [], []>} : vector<8x128xf32>, vector<128x128xf32>, vector<8x128xf32> -> vector<8x128xf32>
    %cst_12 = arith.constant 1.000000e-01 : f32
    %21 = vector.broadcast %cst_12 : f32 to vector<8x128xf32>
    %22 = arith.addf %20, %21 : vector<8x128xf32>
    %23 = math.sin %22 : vector<8x128xf32>
    %cst_13 = arith.constant 0.00999999977 : f32
    %24 = vector.broadcast %cst_13 : f32 to vector<8x128xf32>
    %25 = arith.cmpf ogt, %23, %24 : vector<8x128xf32>
    %26 = arith.extui %25 : vector<8x128xi1> to vector<8x128xi32>
    %27 = arith.sitofp %26 : vector<8x128xi32> to vector<8x128xf32>
    %cst_14 = arith.constant 0.000000e+00 : f32
    %cst_15 = arith.constant 0.00999999977 : f32
    %28 = arith.subf %cst_14, %cst_15 : f32
    %29 = vector.broadcast %28 : f32 to vector<8x128xf32>
    %30 = arith.cmpf olt, %23, %29 : vector<8x128xf32>
    %31 = arith.extui %30 : vector<8x128xi1> to vector<8x128xi32>
    %32 = arith.sitofp %31 : vector<8x128xi32> to vector<8x128xf32>
    %33 = arith.subf %27, %32 : vector<8x128xf32>
    %c1 = arith.constant 1 : index
    %c0_16 = arith.constant 0 : index
    %c0_17 = arith.constant 0 : index
    %34 = vector.load %arg3[%c1, %c0_16, %c0_17] : memref<3x128x128xf32, #tpu.memory_space<vmem>>, vector<1x128x128xf32>
    %35 = vector.shape_cast %34 : vector<1x128x128xf32> to vector<128x128xf32>
    %cst_18 = arith.constant dense<0.000000e+00> : vector<8x128xf32>
    %36 = tpu.matmul %33, %35, %cst_18 {dimension_numbers = #tpu.dot_dimension_numbers<[1], [0], [0], [1], [0, 0, 1, 1], [], []>} : vector<8x128xf32>, vector<128x128xf32>, vector<8x128xf32> -> vector<8x128xf32>
    %cst_19 = arith.constant 1.000000e-01 : f32
    %37 = vector.broadcast %cst_19 : f32 to vector<8x128xf32>
    %38 = arith.addf %36, %37 : vector<8x128xf32>
    %39 = math.sin %38 : vector<8x128xf32>
    %cst_20 = arith.constant 0.00999999977 : f32
    %40 = vector.broadcast %cst_20 : f32 to vector<8x128xf32>
    %41 = arith.cmpf ogt, %39, %40 : vector<8x128xf32>
    %42 = arith.extui %41 : vector<8x128xi1> to vector<8x128xi32>
    %43 = arith.sitofp %42 : vector<8x128xi32> to vector<8x128xf32>
    %cst_21 = arith.constant 0.000000e+00 : f32
    %cst_22 = arith.constant 0.00999999977 : f32
    %44 = arith.subf %cst_21, %cst_22 : f32
    %45 = vector.broadcast %44 : f32 to vector<8x128xf32>
    %46 = arith.cmpf olt, %39, %45 : vector<8x128xf32>
    %47 = arith.extui %46 : vector<8x128xi1> to vector<8x128xi32>
    %48 = arith.sitofp %47 : vector<8x128xi32> to vector<8x128xf32>
    %49 = arith.subf %43, %48 : vector<8x128xf32>
    %c2 = arith.constant 2 : index
    %c0_23 = arith.constant 0 : index
    %c0_24 = arith.constant 0 : index
    %50 = vector.load %arg3[%c2, %c0_23, %c0_24] : memref<3x128x128xf32, #tpu.memory_space<vmem>>, vector<1x128x128xf32>
    %51 = vector.shape_cast %50 : vector<1x128x128xf32> to vector<128x128xf32>
    %cst_25 = arith.constant dense<0.000000e+00> : vector<8x128xf32>
    %52 = tpu.matmul %49, %51, %cst_25 {dimension_numbers = #tpu.dot_dimension_numbers<[1], [0], [0], [1], [0, 0, 1, 1], [], []>} : vector<8x128xf32>, vector<128x128xf32>, vector<8x128xf32> -> vector<8x128xf32>
    %cst_26 = arith.constant 1.000000e-01 : f32
    %53 = vector.broadcast %cst_26 : f32 to vector<8x128xf32>
    %54 = arith.addf %52, %53 : vector<8x128xf32>
    %55 = math.sin %54 : vector<8x128xf32>
    %cst_27 = arith.constant 0.00999999977 : f32
    %56 = vector.broadcast %cst_27 : f32 to vector<8x128xf32>
    %57 = arith.cmpf ogt, %55, %56 : vector<8x128xf32>
    %58 = arith.extui %57 : vector<8x128xi1> to vector<8x128xi32>
    %59 = arith.sitofp %58 : vector<8x128xi32> to vector<8x128xf32>
    %cst_28 = arith.constant 0.000000e+00 : f32
    %cst_29 = arith.constant 0.00999999977 : f32
    %60 = arith.subf %cst_28, %cst_29 : f32
    %61 = vector.broadcast %60 : f32 to vector<8x128xf32>
    %62 = arith.cmpf olt, %55, %61 : vector<8x128xf32>
    %63 = arith.extui %62 : vector<8x128xi1> to vector<8x128xi32>
    %64 = arith.sitofp %63 : vector<8x128xi32> to vector<8x128xf32>
    %65 = arith.subf %59, %64 : vector<8x128xf32>
    %c0_30 = arith.constant 0 : index
    %c0_31 = arith.constant 0 : index
    %66 = vector.load %arg4[%c0_30, %c0_31] : memref<128x4xf32, #tpu.memory_space<vmem>>, vector<128x4xf32>
    %cst_32 = arith.constant dense<0.000000e+00> : vector<8x4xf32>
    %67 = tpu.matmul %65, %66, %cst_32 {dimension_numbers = #tpu.dot_dimension_numbers<[1], [0], [0], [1], [0, 0, 1, 1], [], []>} : vector<8x128xf32>, vector<128x4xf32>, vector<8x4xf32> -> vector<8x4xf32>
    %c0_33 = arith.constant 0 : index
    %c0_34 = arith.constant 0 : index
    %68 = vector.load %arg5[%c0_33, %c0_34] : memref<8x4xf32, #tpu.memory_space<vmem>>, vector<8x4xf32>
    tpu.vector_store %arg5[%c0_33, %c0_34], %67 {strides = array<i32>} : memref<8x4xf32, #tpu.memory_space<vmem>>, vector<8x4xf32>,
    return
  }
  func.func @transform_0(%arg0: i32) -> (i32, i32) {
    %c0_i32 = arith.constant 0 : i32
    %c0_i32_0 = arith.constant 0 : i32
    return %arg0, %c0_i32 : i32, i32
  }
  func.func @transform_1(%arg0: i32) -> (i32, i32) {
    %c0_i32 = arith.constant 0 : i32
    %c0_i32_0 = arith.constant 0 : i32
    %c0_i32_1 = arith.constant 0 : i32
    return %c0_i32, %c0_i32_0 : i32, i32
  }
  func.func @transform_2(%arg0: i32) -> (i32, i32, i32) {
    %c0_i32 = arith.constant 0 : i32
    %c0_i32_0 = arith.constant 0 : i32
    %c0_i32_1 = arith.constant 0 : i32
    %c0_i32_2 = arith.constant 0 : i32
    return %c0_i32, %c0_i32_0, %c0_i32_1 : i32, i32, i32
  }
  func.func @transform_3(%arg0: i32) -> (i32, i32) {
    %c0_i32 = arith.constant 0 : i32
    %c0_i32_0 = arith.constant 0 : i32
    %c0_i32_1 = arith.constant 0 : i32
    return %c0_i32, %c0_i32_0 : i32, i32
  }
  func.func @transform_4(%arg0: i32) -> (i32, i32) {
    %c0_i32 = arith.constant 0 : i32
    %c0_i32_0 = arith.constant 0 : i32
    return %arg0, %c0_i32 : i32, i32
  }
}

</mosaic_0001>

<llo_original>
// kernel: tpu_custom_call.1
$region0: #{tpu_custom_call.1}
  #allocation0 [shape = 'u32[]', space=smem, size = 0x4, offset = 0x4, fixed_abs, tag = 'smem constant byte address 0x4 - core index']
  #allocation1 [shape = 'u32[144,128]{1,0:T(1,128)}', space=vmem, size = 0x12000, scoped, tag = 'internal scratch']
  %s0 = inlined_call_operand.vmem [shape: f32[8,4], index: 0, kind: input, shape index: {}]
  %s1 = inlined_call_operand.vmem [shape: f32[4,128], index: 1, kind: input, shape index: {}]
  %s2 = inlined_call_operand.hbm [shape: f32[3,128,128], index: 2, kind: input, shape index: {}]
  %s3 = inlined_call_operand.vmem [shape: f32[128,4], index: 3, kind: input, shape index: {}]
  %s4 = inlined_call_operand.vmem [shape: f32[8,4], index: 4, kind: output, shape index: {}]
  %s5 = sld [smem:[#allocation0]]
  $region30: #{tpu_custom_call.1} parent=0
    _
  %s7 = ssub.s32 1, %s5
  %s8 = scalar_select 0, %s7, %s5
  $region1: #{tpu_custom_call.1} parent=0
    #allocation2 [shape = 'u8[196608]{0}', space=vmem, size = 0x30000, scoped, tag = 'input window, operand 2, single buffered']
    #allocation3 [shape = 's32[1]{0}', space=sflag, size = 0x4, scoped, tag = 'scoped memory for tpu_custom_call.1']
    %9 = vsyncpa [#allocation3], 0
    // Predicated region
    $region2: #{tpu_custom_call.1} parent=1 // pred_check
      _
    $region3: #{tpu_custom_call.1} parent=1 // pred_check_branch
      %11 = sbr.rel (0) target = $region5
    $region4: #{tpu_custom_call.1} parent=1 // pred_region
      _
    $region5: #{tpu_custom_call.1} parent=1 // pred_fallthru
      _
    // Predicated region
    $region6: #{tpu_custom_call.1} parent=1 // pred_check
      _
    $region7: #{tpu_custom_call.1} parent=1 // pred_check_branch
      %13 = sbr.rel (0) target = $region9
    $region8: #{tpu_custom_call.1} parent=1 // pred_region
      _
    $region9: #{tpu_custom_call.1} parent=1 // pred_fallthru
      _
    // Predicated region
    $region10: #{tpu_custom_call.1} parent=1 // pred_check
      _
    $region11: #{tpu_custom_call.1} parent=1 // pred_check_branch
      %15 = sbr.rel (0) target = $region13
    $region12: #{tpu_custom_call.1} parent=1 // pred_region
      %s17 = ssub.s32 6144, 6144
      %18 = vsyncadd [#allocation3], %s17
      %s19 = sshll.u32 [#allocation2], 4
      %s20 = int_to_ptr.vmem [resolvable:$true] %s19
      %25 = dma.hbm_to_vmem [thread:$0]  %s2, 6144, %s20, [#allocation3], 128, 128, 8
    $region13: #{tpu_custom_call.1} parent=1 // pred_fallthru
      _
    // Predicated region
    $region14: #{tpu_custom_call.1} parent=1 // pred_check
      _
    $region15: #{tpu_custom_call.1} parent=1 // pred_check_branch
      %27 = sbr.rel (0) target = $region17
    $region16: #{tpu_custom_call.1} parent=1 // pred_region
      _
    $region17: #{tpu_custom_call.1} parent=1 // pred_fallthru
      _
    // Predicated region
    $region18: #{tpu_custom_call.1} parent=1 // pred_check
      _
    $region19: #{tpu_custom_call.1} parent=1 // pred_check_branch
      %29 = sbr.rel (0) target = $region21
    $region20: #{tpu_custom_call.1} parent=1 // pred_region
      %30 = dma.done [#allocation3], 6144
    $region21: #{tpu_custom_call.1} parent=1 // pred_fallthru
      _
    %v31 = vld [vmem:[%s0] sm:$0xff]
    %v32 = vld [vmem:[%s1] sm:$0xf]
    %vm33 = vcmask 31744
    %v35 = vsel %vm33, %v31, 0
    %vm37 = vcmask 1043456
    %v39 = vsel %vm37, %v32, 0
    %41 = vmatprep.subr.mxu0 0.0
    %42 = vmatpush1.msra.mxu0 %v39
    %43 = vmatprep.subr.mxu0 0.0
    %44 = vmatpush1.msra.mxu0 0.0
    %45 = vmatprep.subr.mxu0 0.0
    %46 = vmatpush1.msra.mxu0 0.0
    %47 = vmatprep.subr.mxu0 0.0
    %48 = vmatpush1.msra.mxu0 0.0
    %49 = vmatprep.subr.mxu0 0.0
    %50 = vmatpush1.msra.mxu0 0.0
    %51 = vmatprep.subr.mxu0 0.0
    %52 = vmatpush1.msra.mxu0 0.0
    %53 = vmatprep.subr.mxu0 0.0
    %54 = vmatpush1.msra.mxu0 0.0
    %55 = vmatprep.subr.mxu0 0.0
    %56 = vmatpush1.msra.mxu0 0.0
    %57 = vmatprep.subr.mxu0 0.0
    %58 = vmatpush1.msra.mxu0 0.0
    %59 = vmatprep.subr.mxu0 0.0
    %60 = vmatpush1.msra.mxu0 0.0
    %61 = vmatprep.subr.mxu0 0.0
    %62 = vmatpush1.msra.mxu0 0.0
    %63 = vmatprep.subr.mxu0 0.0
    %64 = vmatpush1.msra.mxu0 0.0
    %65 = vmatprep.subr.mxu0 0.0
    %66 = vmatpush1.msra.mxu0 0.0
    %67 = vmatprep.subr.mxu0 0.0
    %68 = vmatpush1.msra.mxu0 0.0
    %69 = vmatprep.subr.mxu0 0.0
    %70 = vmatpush1.msra.mxu0 0.0
    %71 = vmatprep.subr.mxu0 0.0
    %72 = vmatpush1.msra.mxu0 0.0
    %73 = vmatprep.subr.mxu0 0.0
    %74 = vmatpush1.msra.mxu0 0.0
    %75 = vmatprep.subr.mxu0 0.0
    %76 = vmatpush1.msra.mxu0 0.0
    %77 = vmatprep.subr.mxu0 0.0
    %78 = vmatpush1.msra.mxu0 0.0
    %79 = vmatprep.subr.mxu0 0.0
    %80 = vmatpush1.msra.mxu0 0.0
    %81 = vmatprep.subr.mxu0 0.0
    %82 = vmatpush1.msra.mxu0 0.0
    %83 = vmatprep.subr.mxu0 0.0
    %84 = vmatpush1.msra.mxu0 0.0
    %85 = vmatprep.subr.mxu0 0.0
    %86 = vmatpush1.msra.mxu0 0.0
    %87 = vmatprep.subr.mxu0 0.0
    %88 = vmatpush1.msra.mxu0 0.0
    %89 = vmatprep.subr.mxu0 0.0
    %90 = vmatpush1.msra.mxu0 0.0
    %91 = vmatprep.subr.mxu0 0.0
    %92 = vmatpush1.msra.mxu0 0.0
    %93 = vmatprep.subr.mxu0 0.0
    %94 = vmatpush1.msra.mxu0 0.0
    %95 = vmatprep.subr.mxu0 0.0
    %96 = vmatpush1.msra.mxu0 0.0
    %97 = vmatprep.subr.mxu0 0.0
    %98 = vmatpush1.msra.mxu0 0.0
    %99 = vmatprep.subr.mxu0 0.0
    %100 = vmatpush1.msra.mxu0 0.0
    %101 = vmatprep.subr.mxu0 0.0
    %102 = vmatpush1.msra.mxu0 0.0
    %103 = vmatprep.subr.mxu0 0.0
    %104 = vmatpush1.msra.mxu0 0.0
    %105 = vmatprep.mubr.f32.mxu0 0.0
    %106 = vmatmul.mubr.f32.gmra.mrb[0].mxu0 %v35
    %v107 = vpop.f32.mrb[0].mxu0
    %v108 = vadd.f32 0.0, %v107
    %v109 = vpop.f32.mrb[0].mxu0
    %110 = vdwg.mxu0
    %v111 = vmul.f32 %v108, 10.0
    %v112 = vadd.f32 %v111, 0.1
    %v113 = vand.u32 2147483647, %v112
    %vm114 = vcmp.le.f32.partialorder %v113, 0.7853982
    %vm115 = vcmp.lt.s32.totalorder %v112, 0
    %v116 = vand.u32 %v112, 2139095040
    %v117 = vshrl.u32 %v116, 23
    %v118 = vsub.s32 %v117, 127
    %v119 = vand.u32 2147483647, %v112
    %v120 = vand.u32 %v119, 8388607
    %v121 = vor.u32 %v120, 8388608
    %v122 = vsub.s32 0, %v121
    %v123 = vadd.s32 %v118, 1
    %vm124 = vcmp.gt.s32.totalorder %v123, 0
    %v125 = vsel %vm124, %v123, 0
    %v126 = vshrl.u32 %v125, 5
    %v127 = vand.u32 %v125, 31
    %v128 = vsub.s32 32, %v127
    %v129 = vshrl.u32 683565275, %v128
    %v130 = vshll.u32 683565275, %v127
    %v131 = vshrl.u32 2475754826, %v128
    %v132 = vor.u32 %v130, %v131
    %v133 = vshll.u32 2475754826, %v127
    %v134 = vshrl.u32 2131351028, %v128
    %v135 = vor.u32 %v133, %v134
    %v136 = vshll.u32 2131351028, %v127
    %v137 = vshrl.u32 2102212464, %v128
    %v138 = vor.u32 %v136, %v137
    %v139 = vshll.u32 2102212464, %v127
    %v140 = vshrl.u32 920167782, %v128
    %v141 = vor.u32 %v139, %v140
    %v142 = vshll.u32 920167782, %v127
    %v143 = vshrl.u32 1326507024, %v128
    %v144 = vor.u32 %v142, %v143
    %vm145 = vcmp.lt.s32.totalorder %v126, 1
    %vm146 = vcmp.lt.s32.totalorder %v126, 2
    %vm147 = vcmp.lt.s32.totalorder %v126, 3
    %vm148 = vcmp.lt.s32.totalorder %v126, 4
    %v149 = vsel %vm145, %v129, %v132
    %v150 = vsel %vm148, %v138, 2102212464
    %v151 = vsel %vm147, %v135, %v150
    %v152 = vsel %vm146, %v149, %v151
    %v153 = vsel %vm145, %v132, %v135
    %v154 = vsel %vm148, %v141, 920167782
    %v155 = vsel %vm147, %v138, %v154
    %v156 = vsel %vm146, %v153, %v155
    %v157 = vsel %vm145, %v135, %v138
    %v158 = vsel %vm148, %v144, 1326507024
    %v159 = vsel %vm147, %v141, %v158
    %v160 = vsel %vm146, %v157, %v159
    %v161 = vshll.u32 %v121, 8
    %v162 = vmul.u32.u64.compose %v161, %v160
    %v163 = vextract.low.u32 %v162
    %v164 = vextract.high.u32 %v162
    %v165 = vmul.u32.u64.compose %v161, %v156
    %v166 = vextract.low.u32 %v165
    %v167 = vextract.high.u32 %v165
    %v168 = vmul.u32 %v161, %v152
    %v169 = vadd.s32 %v164, %v166
    %vm170 = vc.u32 %v164, %v166
    %v171 = vadd.s32 %v167, 1
    %v172 = vsel %vm170, %v171, %v167
    %v173 = vadd.s32 %v168, %v172
    %v174 = vadd.s32 %v173, 536870912
    %v175 = vshrl.u32 %v174, 30
    %v176 = vshll.u32 %v175, 30
    %v177 = vsub.s32 %v173, %v176
    %vm178 = vcmp.lt.s32.totalorder %v177, 0
    %v179 = vsub.s32 0, %v177
    %v180 = vsel %vm178, %v179, %v177
    %v181 = vclz %v180
    %v182 = vsub.s32 %v181, 2
    %vm183 = vcmp.gt.s32.totalorder 0, %v182
    %v184 = vsel %vm183, 0, %v182
    %v185 = vsub.s32 32, %v184
    %v186 = vshll.u32 %v177, %v184
    %v187 = vshrl.u32 %v169, %v185
    %v188 = vor.u32 %v186, %v187
    %v189 = vsub.s32 4294967266, %v184
    %v190 = vadd.s32 %v189, 127
    %v191 = vshll.u32 %v190, 23
    %v192 = vor.u32 4788187, %v191
    %v193 = vand.u32 2147483647, %v192
    %v195 = vcvt.s32.f32 %v188
    %v196 = vmul.f32 %v195, %v193
    %v197 = vxor.u32 %v196, 2147483648
    %v198 = vsel %vm115, %v197, %v196
    %v199 = vsub.s32 4, %v175
    %v200 = vsel %vm115, %v199, %v175
    %v201 = vsel %vm114, %v112, %v198
    %v202 = vsel %vm114, 0, %v200
    %v203 = vcosq.f32.pop %v201
    %v204 = vsinq.f32.pop %v201
    %vm205 = vweird.f32 %v112
    %v206 = vadd.s32 %v202, 3
    %v207 = vand.u32 %v206, 3
    %vm208 = vcmp.lt.s32.totalorder %v207, 2
    %vm209 = vcmp.eq.s32.totalorder %v207, 0
    %v210 = vxor.u32 %v204, 2147483648
    %v211 = vsel %vm209, %v203, %v210
    %vm212 = vcmp.eq.s32.totalorder %v207, 2
    %v213 = vxor.u32 %v203, 2147483648
    %v214 = vsel %vm212, %v213, %v204
    %v215 = vsel %vm208, %v211, %v214
    %v216 = vsel %vm205, nan, %v215
    %vm217 = vcmp.gt.f32.partialorder %v216, 0.01
    %v218 = vsel %vm217, 1, 0
    %v219 = vcvt.s32.f32 %v218
    %vm220 = vcmp.lt.f32.partialorder %v216, -0.01
    %v221 = vsel %vm220, 1, 0
    %v222 = vcvt.s32.f32 %v221
    %v223 = vsub.f32 %v219, %v222
    %v224 = vld [vmem:[#allocation2] sm:$0xff]
    %v225 = vld [vmem:[#allocation2 + $0x8] sm:$0xff]
    %v226 = vld [vmem:[#allocation2 + $0x10] sm:$0xff]
    %v227 = vld [vmem:[#allocation2 + $0x18] sm:$0xff]
    %v228 = vld [vmem:[#allocation2 + $0x20] sm:$0xff]
    %v229 = vld [vmem:[#allocation2 + $0x28] sm:$0xff]
    %v230 = vld [vmem:[#allocation2 + $0x30] sm:$0xff]
    %v231 = vld [vmem:[#allocation2 + $0x38] sm:$0xff]
    %v232 = vld [vmem:[#allocation2 + $0x40] sm:$0xff]
    %v233 = vld [vmem:[#allocation2 + $0x48] sm:$0xff]
    %v234 = vld [vmem:[#allocation2 + $0x50] sm:$0xff]
    %v235 = vld [vmem:[#allocation2 + $0x58] sm:$0xff]
    %v236 = vld [vmem:[#allocation2 + $0x60] sm:$0xff]
    %v237 = vld [vmem:[#allocation2 + $0x68] sm:$0xff]
    %v238 = vld [vmem:[#allocation2 + $0x70] sm:$0xff]
    %v239 = vld [vmem:[#allocation2 + $0x78] sm:$0xff]
    %240 = vmatprep.subr.mxu0 0.0
    %241 = vmatpush1.msra.mxu0 %v224
    %242 = vmatprep.subr.mxu0 0.0
    %243 = vmatpush1.msra.mxu0 %v225
    %244 = vmatprep.subr.mxu0 0.0
    %245 = vmatpush1.msra.mxu0 %v226
    %246 = vmatprep.subr.mxu0 0.0
    %247 = vmatpush1.msra.mxu0 %v227
    %248 = vmatprep.subr.mxu0 0.0
    %249 = vmatpush1.msra.mxu0 %v228
    %250 = vmatprep.subr.mxu0 0.0
    %251 = vmatpush1.msra.mxu0 %v229
    %252 = vmatprep.subr.mxu0 0.0
    %253 = vmatpush1.msra.mxu0 %v230
    %254 = vmatprep.subr.mxu0 0.0
    %255 = vmatpush1.msra.mxu0 %v231
    %256 = vmatprep.subr.mxu0 0.0
    %257 = vmatpush1.msra.mxu0 %v232
    %258 = vmatprep.subr.mxu0 0.0
    %259 = vmatpush1.msra.mxu0 %v233
    %260 = vmatprep.subr.mxu0 0.0
    %261 = vmatpush1.msra.mxu0 %v234
    %262 = vmatprep.subr.mxu0 0.0
    %263 = vmatpush1.msra.mxu0 %v235
    %264 = vmatprep.subr.mxu0 0.0
    %265 = vmatpush1.msra.mxu0 %v236
    %266 = vmatprep.subr.mxu0 0.0
    %267 = vmatpush1.msra.mxu0 %v237
    %268 = vmatprep.subr.mxu0 0.0
    %269 = vmatpush1.msra.mxu0 %v238
    %270 = vmatprep.subr.mxu0 0.0
    %271 = vmatpush1.msra.mxu0 %v239
    %272 = vmatprep.subr.mxu0 0.0
    %273 = vmatpush1.msra.mxu0 0.0
    %274 = vmatprep.subr.mxu0 0.0
    %275 = vmatpush1.msra.mxu0 0.0
    %276 = vmatprep.subr.mxu0 0.0
    %277 = vmatpush1.msra.mxu0 0.0
    %278 = vmatprep.subr.mxu0 0.0
    %279 = vmatpush1.msra.mxu0 0.0
    %280 = vmatprep.subr.mxu0 0.0
    %281 = vmatpush1.msra.mxu0 0.0
    %282 = vmatprep.subr.mxu0 0.0
    %283 = vmatpush1.msra.mxu0 0.0
    %284 = vmatprep.subr.mxu0 0.0
    %285 = vmatpush1.msra.mxu0 0.0
    %286 = vmatprep.subr.mxu0 0.0
    %287 = vmatpush1.msra.mxu0 0.0
    %288 = vmatprep.subr.mxu0 0.0
    %289 = vmatpush1.msra.mxu0 0.0
    %290 = vmatprep.subr.mxu0 0.0
    %291 = vmatpush1.msra.mxu0 0.0
    %292 = vmatprep.subr.mxu0 0.0
    %293 = vmatpush1.msra.mxu0 0.0
    %294 = vmatprep.subr.mxu0 0.0
    %295 = vmatpush1.msra.mxu0 0.0
    %296 = vmatprep.subr.mxu0 0.0
    %297 = vmatpush1.msra.mxu0 0.0
    %298 = vmatprep.subr.mxu0 0.0
    %299 = vmatpush1.msra.mxu0 0.0
    %300 = vmatprep.subr.mxu0 0.0
    %301 = vmatpush1.msra.mxu0 0.0
    %302 = vmatprep.subr.mxu0 0.0
    %303 = vmatpush1.msra.mxu0 0.0
    %304 = vmatprep.mubr.f32.mxu0 0.0
    %305 = vmatmul.mubr.f32.gmra.mrb[0].mxu0 %v223
    %v306 = vpop.f32.mrb[0].mxu0
    %v307 = vadd.f32 0.1, %v306
    %v308 = vpop.f32.mrb[0].mxu0
    %309 = vdwg.mxu0
    %v310 = vand.u32 2147483647, %v307
    %vm311 = vcmp.le.f32.partialorder %v310, 0.7853982
    %vm312 = vcmp.lt.s32.totalorder %v307, 0
    %v313 = vand.u32 %v307, 2139095040
    %v314 = vshrl.u32 %v313, 23
    %v315 = vsub.s32 %v314, 127
    %v316 = vand.u32 2147483647, %v307
    %v317 = vand.u32 %v316, 8388607
    %v318 = vor.u32 %v317, 8388608
    %v319 = vsub.s32 0, %v318
    %v320 = vadd.s32 %v315, 1
    %vm321 = vcmp.gt.s32.totalorder %v320, 0
    %v322 = vsel %vm321, %v320, 0
    %v323 = vshrl.u32 %v322, 5
    %v324 = vand.u32 %v322, 31
    %v325 = vsub.s32 32, %v324
    %v326 = vshrl.u32 683565275, %v325
    %v327 = vshll.u32 683565275, %v324
    %v328 = vshrl.u32 2475754826, %v325
    %v329 = vor.u32 %v327, %v328
    %v330 = vshll.u32 2475754826, %v324
    %v331 = vshrl.u32 2131351028, %v325
    %v332 = vor.u32 %v330, %v331
    %v333 = vshll.u32 2131351028, %v324
    %v334 = vshrl.u32 2102212464, %v325
    %v335 = vor.u32 %v333, %v334
    %v336 = vshll.u32 2102212464, %v324
    %v337 = vshrl.u32 920167782, %v325
    %v338 = vor.u32 %v336, %v337
    %v339 = vshll.u32 920167782, %v324
    %v340 = vshrl.u32 1326507024, %v325
    %v341 = vor.u32 %v339, %v340
    %vm342 = vcmp.lt.s32.totalorder %v323, 1
    %vm343 = vcmp.lt.s32.totalorder %v323, 2
    %vm344 = vcmp.lt.s32.totalorder %v323, 3
    %vm345 = vcmp.lt.s32.totalorder %v323, 4
    %v346 = vsel %vm342, %v326, %v329
    %v347 = vsel %vm345, %v335, 2102212464
    %v348 = vsel %vm344, %v332, %v347
    %v349 = vsel %vm343, %v346, %v348
    %v350 = vsel %vm342, %v329, %v332
    %v351 = vsel %vm345, %v338, 920167782
    %v352 = vsel %vm344, %v335, %v351
    %v353 = vsel %vm343, %v350, %v352
    %v354 = vsel %vm342, %v332, %v335
    %v355 = vsel %vm345, %v341, 1326507024
    %v356 = vsel %vm344, %v338, %v355
    %v357 = vsel %vm343, %v354, %v356
    %v358 = vshll.u32 %v318, 8
    %v359 = vmul.u32.u64.compose %v358, %v357
    %v360 = vextract.low.u32 %v359
    %v361 = vextract.high.u32 %v359
    %v362 = vmul.u32.u64.compose %v358, %v353
    %v363 = vextract.low.u32 %v362
    %v364 = vextract.high.u32 %v362
    %v365 = vmul.u32 %v358, %v349
    %v366 = vadd.s32 %v361, %v363
    %vm367 = vc.u32 %v361, %v363
    %v368 = vadd.s32 %v364, 1
    %v369 = vsel %vm367, %v368, %v364
    %v370 = vadd.s32 %v365, %v369
    %v371 = vadd.s32 %v370, 536870912
    %v372 = vshrl.u32 %v371, 30
    %v373 = vshll.u32 %v372, 30
    %v374 = vsub.s32 %v370, %v373
    %vm375 = vcmp.lt.s32.totalorder %v374, 0
    %v376 = vsub.s32 0, %v374
    %v377 = vsel %vm375, %v376, %v374
    %v378 = vclz %v377
    %v379 = vsub.s32 %v378, 2
    %vm380 = vcmp.gt.s32.totalorder 0, %v379
    %v381 = vsel %vm380, 0, %v379
    %v382 = vsub.s32 32, %v381
    %v383 = vshll.u32 %v374, %v381
    %v384 = vshrl.u32 %v366, %v382
    %v385 = vor.u32 %v383, %v384
    %v386 = vsub.s32 4294967266, %v381
    %v387 = vadd.s32 %v386, 127
    %v388 = vshll.u32 %v387, 23
    %v389 = vor.u32 4788187, %v388
    %v390 = vand.u32 2147483647, %v389
    %v392 = vcvt.s32.f32 %v385
    %v393 = vmul.f32 %v392, %v390
    %v394 = vxor.u32 %v393, 2147483648
    %v395 = vsel %vm312, %v394, %v393
    %v396 = vsub.s32 4, %v372
    %v397 = vsel %vm312, %v396, %v372
    %v398 = vsel %vm311, %v307, %v395
    %v399 = vsel %vm311, 0, %v397
    %v400 = vcosq.f32.pop %v398
    %v401 = vsinq.f32.pop %v398
    %vm402 = vweird.f32 %v307
    %v403 = vadd.s32 %v399, 3
    %v404 = vand.u32 %v403, 3
    %vm405 = vcmp.lt.s32.totalorder %v404, 2
    %vm406 = vcmp.eq.s32.totalorder %v404, 0
    %v407 = vxor.u32 %v401, 2147483648
    %v408 = vsel %vm406, %v400, %v407
    %vm409 = vcmp.eq.s32.totalorder %v404, 2
    %v410 = vxor.u32 %v400, 2147483648
    %v411 = vsel %vm409, %v410, %v401
    %v412 = vsel %vm405, %v408, %v411
    %v413 = vsel %vm402, nan, %v412
    %vm414 = vcmp.gt.f32.partialorder %v413, 0.01
    %v415 = vsel %vm414, 1, 0
    %v416 = vcvt.s32.f32 %v415
    %vm417 = vcmp.lt.f32.partialorder %v413, -0.01
    %v418 = vsel %vm417, 1, 0
    %v419 = vcvt.s32.f32 %v418
    %v420 = vsub.f32 %v416, %v419
    %s421 = scalar_lea.vmem [#allocation2], 128
    %v422 = vld [vmem:[%s421] sm:$0xff]
    %v423 = vld [vmem:[%s421 + $0x8] sm:$0xff]
    %v424 = vld [vmem:[%s421 + $0x10] sm:$0xff]
    %v425 = vld [vmem:[%s421 + $0x18] sm:$0xff]
    %v426 = vld [vmem:[%s421 + $0x20] sm:$0xff]
    %v427 = vld [vmem:[%s421 + $0x28] sm:$0xff]
    %v428 = vld [vmem:[%s421 + $0x30] sm:$0xff]
    %v429 = vld [vmem:[%s421 + $0x38] sm:$0xff]
    %v430 = vld [vmem:[%s421 + $0x40] sm:$0xff]
    %v431 = vld [vmem:[%s421 + $0x48] sm:$0xff]
    %v432 = vld [vmem:[%s421 + $0x50] sm:$0xff]
    %v433 = vld [vmem:[%s421 + $0x58] sm:$0xff]
    %v434 = vld [vmem:[%s421 + $0x60] sm:$0xff]
    %v435 = vld [vmem:[%s421 + $0x68] sm:$0xff]
    %v436 = vld [vmem:[%s421 + $0x70] sm:$0xff]
    %v437 = vld [vmem:[%s421 + $0x78] sm:$0xff]
    %438 = vmatprep.subr.mxu0 0.0
    %439 = vmatpush1.msra.mxu0 %v422
    %440 = vmatprep.subr.mxu0 0.0
    %441 = vmatpush1.msra.mxu0 %v423
    %442 = vmatprep.subr.mxu0 0.0
    %443 = vmatpush1.msra.mxu0 %v424
    %444 = vmatprep.subr.mxu0 0.0
    %445 = vmatpush1.msra.mxu0 %v425
    %446 = vmatprep.subr.mxu0 0.0
    %447 = vmatpush1.msra.mxu0 %v426
    %448 = vmatprep.subr.mxu0 0.0
    %449 = vmatpush1.msra.mxu0 %v427
    %450 = vmatprep.subr.mxu0 0.0
    %451 = vmatpush1.msra.mxu0 %v428
    %452 = vmatprep.subr.mxu0 0.0
    %453 = vmatpush1.msra.mxu0 %v429
    %454 = vmatprep.subr.mxu0 0.0
    %455 = vmatpush1.msra.mxu0 %v430
    %456 = vmatprep.subr.mxu0 0.0
    %457 = vmatpush1.msra.mxu0 %v431
    %458 = vmatprep.subr.mxu0 0.0
    %459 = vmatpush1.msra.mxu0 %v432
    %460 = vmatprep.subr.mxu0 0.0
    %461 = vmatpush1.msra.mxu0 %v433
    %462 = vmatprep.subr.mxu0 0.0
    %463 = vmatpush1.msra.mxu0 %v434
    %464 = vmatprep.subr.mxu0 0.0
    %465 = vmatpush1.msra.mxu0 %v435
    %466 = vmatprep.subr.mxu0 0.0
    %467 = vmatpush1.msra.mxu0 %v436
    %468 = vmatprep.subr.mxu0 0.0
    %469 = vmatpush1.msra.mxu0 %v437
    %470 = vmatprep.subr.mxu0 0.0
    %471 = vmatpush1.msra.mxu0 0.0
    %472 = vmatprep.subr.mxu0 0.0
    %473 = vmatpush1.msra.mxu0 0.0
    %474 = vmatprep.subr.mxu0 0.0
    %475 = vmatpush1.msra.mxu0 0.0
    %476 = vmatprep.subr.mxu0 0.0
    %477 = vmatpush1.msra.mxu0 0.0
    %478 = vmatprep.subr.mxu0 0.0
    %479 = vmatpush1.msra.mxu0 0.0
    %480 = vmatprep.subr.mxu0 0.0
    %481 = vmatpush1.msra.mxu0 0.0
    %482 = vmatprep.subr.mxu0 0.0
    %483 = vmatpush1.msra.mxu0 0.0
    %484 = vmatprep.subr.mxu0 0.0
    %485 = vmatpush1.msra.mxu0 0.0
    %486 = vmatprep.subr.mxu0 0.0
    %487 = vmatpush1.msra.mxu0 0.0
    %488 = vmatprep.subr.mxu0 0.0
    %489 = vmatpush1.msra.mxu0 0.0
    %490 = vmatprep.subr.mxu0 0.0
    %491 = vmatpush1.msra.mxu0 0.0
    %492 = vmatprep.subr.mxu0 0.0
    %493 = vmatpush1.msra.mxu0 0.0
    %494 = vmatprep.subr.mxu0 0.0
    %495 = vmatpush1.msra.mxu0 0.0
    %496 = vmatprep.subr.mxu0 0.0
    %497 = vmatpush1.msra.mxu0 0.0
    %498 = vmatprep.subr.mxu0 0.0
    %499 = vmatpush1.msra.mxu0 0.0
    %500 = vmatprep.subr.mxu0 0.0
    %501 = vmatpush1.msra.mxu0 0.0
    %502 = vmatprep.mubr.f32.mxu0 0.0
    %503 = vmatmul.mubr.f32.gmra.mrb[0].mxu0 %v420
    %v504 = vpop.f32.mrb[0].mxu0
    %v505 = vadd.f32 0.1, %v504
    %v506 = vpop.f32.mrb[0].mxu0
    %507 = vdwg.mxu0
    %v508 = vand.u32 2147483647, %v505
    %vm509 = vcmp.le.f32.partialorder %v508, 0.7853982
    %vm510 = vcmp.lt.s32.totalorder %v505, 0
    %v511 = vand.u32 %v505, 2139095040
    %v512 = vshrl.u32 %v511, 23
    %v513 = vsub.s32 %v512, 127
    %v514 = vand.u32 2147483647, %v505
    %v515 = vand.u32 %v514, 8388607
    %v516 = vor.u32 %v515, 8388608
    %v517 = vsub.s32 0, %v516
    %v518 = vadd.s32 %v513, 1
    %vm519 = vcmp.gt.s32.totalorder %v518, 0
    %v520 = vsel %vm519, %v518, 0
    %v521 = vshrl.u32 %v520, 5
    %v522 = vand.u32 %v520, 31
    %v523 = vsub.s32 32, %v522
    %v524 = vshrl.u32 683565275, %v523
    %v525 = vshll.u32 683565275, %v522
    %v526 = vshrl.u32 2475754826, %v523
    %v527 = vor.u32 %v525, %v526
    %v528 = vshll.u32 2475754826, %v522
    %v529 = vshrl.u32 2131351028, %v523
    %v530 = vor.u32 %v528, %v529
    %v531 = vshll.u32 2131351028, %v522
    %v532 = vshrl.u32 2102212464, %v523
    %v533 = vor.u32 %v531, %v532
    %v534 = vshll.u32 2102212464, %v522
    %v535 = vshrl.u32 920167782, %v523
    %v536 = vor.u32 %v534, %v535
    %v537 = vshll.u32 920167782, %v522
    %v538 = vshrl.u32 1326507024, %v523
    %v539 = vor.u32 %v537, %v538
    %vm540 = vcmp.lt.s32.totalorder %v521, 1
    %vm541 = vcmp.lt.s32.totalorder %v521, 2
    %vm542 = vcmp.lt.s32.totalorder %v521, 3
    %vm543 = vcmp.lt.s32.totalorder %v521, 4
    %v544 = vsel %vm540, %v524, %v527
    %v545 = vsel %vm543, %v533, 2102212464
    %v546 = vsel %vm542, %v530, %v545
    %v547 = vsel %vm541, %v544, %v546
    %v548 = vsel %vm540, %v527, %v530
    %v549 = vsel %vm543, %v536, 920167782
    %v550 = vsel %vm542, %v533, %v549
    %v551 = vsel %vm541, %v548, %v550
    %v552 = vsel %vm540, %v530, %v533
    %v553 = vsel %vm543, %v539, 1326507024
    %v554 = vsel %vm542, %v536, %v553
    %v555 = vsel %vm541, %v552, %v554
    %v556 = vshll.u32 %v516, 8
    %v557 = vmul.u32.u64.compose %v556, %v555
    %v558 = vextract.low.u32 %v557
    %v559 = vextract.high.u32 %v557
    %v560 = vmul.u32.u64.compose %v556, %v551
    %v561 = vextract.low.u32 %v560
    %v562 = vextract.high.u32 %v560
    %v563 = vmul.u32 %v556, %v547
    %v564 = vadd.s32 %v559, %v561
    %vm565 = vc.u32 %v559, %v561
    %v566 = vadd.s32 %v562, 1
    %v567 = vsel %vm565, %v566, %v562
    %v568 = vadd.s32 %v563, %v567
    %v569 = vadd.s32 %v568, 536870912
    %v570 = vshrl.u32 %v569, 30
    %v571 = vshll.u32 %v570, 30
    %v572 = vsub.s32 %v568, %v571
    %vm573 = vcmp.lt.s32.totalorder %v572, 0
    %v574 = vsub.s32 0, %v572
    %v575 = vsel %vm573, %v574, %v572
    %v576 = vclz %v575
    %v577 = vsub.s32 %v576, 2
    %vm578 = vcmp.gt.s32.totalorder 0, %v577
    %v579 = vsel %vm578, 0, %v577
    %v580 = vsub.s32 32, %v579
    %v581 = vshll.u32 %v572, %v579
    %v582 = vshrl.u32 %v564, %v580
    %v583 = vor.u32 %v581, %v582
    %v584 = vsub.s32 4294967266, %v579
    %v585 = vadd.s32 %v584, 127
    %v586 = vshll.u32 %v585, 23
    %v587 = vor.u32 4788187, %v586
    %v588 = vand.u32 2147483647, %v587
    %v590 = vcvt.s32.f32 %v583
    %v591 = vmul.f32 %v590, %v588
    %v592 = vxor.u32 %v591, 2147483648
    %v593 = vsel %vm510, %v592, %v591
    %v594 = vsub.s32 4, %v570
    %v595 = vsel %vm510, %v594, %v570
    %v596 = vsel %vm509, %v505, %v593
    %v597 = vsel %vm509, 0, %v595
    %v598 = vcosq.f32.pop %v596
    %v599 = vsinq.f32.pop %v596
    %vm600 = vweird.f32 %v505
    %v601 = vadd.s32 %v597, 3
    %v602 = vand.u32 %v601, 3
    %vm603 = vcmp.lt.s32.totalorder %v602, 2
    %vm604 = vcmp.eq.s32.totalorder %v602, 0
    %v605 = vxor.u32 %v599, 2147483648
    %v606 = vsel %vm604, %v598, %v605
    %vm607 = vcmp.eq.s32.totalorder %v602, 2
    %v608 = vxor.u32 %v598, 2147483648
    %v609 = vsel %vm607, %v608, %v599
    %v610 = vsel %vm603, %v606, %v609
    %v611 = vsel %vm600, nan, %v610
    %vm612 = vcmp.gt.f32.partialorder %v611, 0.01
    %v613 = vsel %vm612, 1, 0
    %v614 = vcvt.s32.f32 %v613
    %vm615 = vcmp.lt.f32.partialorder %v611, -0.01
    %v616 = vsel %vm615, 1, 0
    %v617 = vcvt.s32.f32 %v616
    %v618 = vsub.f32 %v614, %v617
    %s619 = scalar_lea.vmem [#allocation2], 256
    %v620 = vld [vmem:[%s619] sm:$0xff]
    %v621 = vld [vmem:[%s619 + $0x8] sm:$0xff]
    %v622 = vld [vmem:[%s619 + $0x10] sm:$0xff]
    %v623 = vld [vmem:[%s619 + $0x18] sm:$0xff]
    %v624 = vld [vmem:[%s619 + $0x20] sm:$0xff]
    %v625 = vld [vmem:[%s619 + $0x28] sm:$0xff]
    %v626 = vld [vmem:[%s619 + $0x30] sm:$0xff]
    %v627 = vld [vmem:[%s619 + $0x38] sm:$0xff]
    %v628 = vld [vmem:[%s619 + $0x40] sm:$0xff]
    %v629 = vld [vmem:[%s619 + $0x48] sm:$0xff]
    %v630 = vld [vmem:[%s619 + $0x50] sm:$0xff]
    %v631 = vld [vmem:[%s619 + $0x58] sm:$0xff]
    %v632 = vld [vmem:[%s619 + $0x60] sm:$0xff]
    %v633 = vld [vmem:[%s619 + $0x68] sm:$0xff]
    %v634 = vld [vmem:[%s619 + $0x70] sm:$0xff]
    %v635 = vld [vmem:[%s619 + $0x78] sm:$0xff]
    %636 = vmatprep.subr.mxu0 0.0
    %637 = vmatpush1.msra.mxu0 %v620
    %638 = vmatprep.subr.mxu0 0.0
    %639 = vmatpush1.msra.mxu0 %v621
    %640 = vmatprep.subr.mxu0 0.0
    %641 = vmatpush1.msra.mxu0 %v622
    %642 = vmatprep.subr.mxu0 0.0
    %643 = vmatpush1.msra.mxu0 %v623
    %644 = vmatprep.subr.mxu0 0.0
    %645 = vmatpush1.msra.mxu0 %v624
    %646 = vmatprep.subr.mxu0 0.0
    %647 = vmatpush1.msra.mxu0 %v625
    %648 = vmatprep.subr.mxu0 0.0
    %649 = vmatpush1.msra.mxu0 %v626
    %650 = vmatprep.subr.mxu0 0.0
    %651 = vmatpush1.msra.mxu0 %v627
    %652 = vmatprep.subr.mxu0 0.0
    %653 = vmatpush1.msra.mxu0 %v628
    %654 = vmatprep.subr.mxu0 0.0
    %655 = vmatpush1.msra.mxu0 %v629
    %656 = vmatprep.subr.mxu0 0.0
    %657 = vmatpush1.msra.mxu0 %v630
    %658 = vmatprep.subr.mxu0 0.0
    %659 = vmatpush1.msra.mxu0 %v631
    %660 = vmatprep.subr.mxu0 0.0
    %661 = vmatpush1.msra.mxu0 %v632
    %662 = vmatprep.subr.mxu0 0.0
    %663 = vmatpush1.msra.mxu0 %v633
    %664 = vmatprep.subr.mxu0 0.0
    %665 = vmatpush1.msra.mxu0 %v634
    %666 = vmatprep.subr.mxu0 0.0
    %667 = vmatpush1.msra.mxu0 %v635
    %668 = vmatprep.subr.mxu0 0.0
    %669 = vmatpush1.msra.mxu0 0.0
    %670 = vmatprep.subr.mxu0 0.0
    %671 = vmatpush1.msra.mxu0 0.0
    %672 = vmatprep.subr.mxu0 0.0
    %673 = vmatpush1.msra.mxu0 0.0
    %674 = vmatprep.subr.mxu0 0.0
    %675 = vmatpush1.msra.mxu0 0.0
    %676 = vmatprep.subr.mxu0 0.0
    %677 = vmatpush1.msra.mxu0 0.0
    %678 = vmatprep.subr.mxu0 0.0
    %679 = vmatpush1.msra.mxu0 0.0
    %680 = vmatprep.subr.mxu0 0.0
    %681 = vmatpush1.msra.mxu0 0.0
    %682 = vmatprep.subr.mxu0 0.0
    %683 = vmatpush1.msra.mxu0 0.0
    %684 = vmatprep.subr.mxu0 0.0
    %685 = vmatpush1.msra.mxu0 0.0
    %686 = vmatprep.subr.mxu0 0.0
    %687 = vmatpush1.msra.mxu0 0.0
    %688 = vmatprep.subr.mxu0 0.0
    %689 = vmatpush1.msra.mxu0 0.0
    %690 = vmatprep.subr.mxu0 0.0
    %691 = vmatpush1.msra.mxu0 0.0
    %692 = vmatprep.subr.mxu0 0.0
    %693 = vmatpush1.msra.mxu0 0.0
    %694 = vmatprep.subr.mxu0 0.0
    %695 = vmatpush1.msra.mxu0 0.0
    %696 = vmatprep.subr.mxu0 0.0
    %697 = vmatpush1.msra.mxu0 0.0
    %698 = vmatprep.subr.mxu0 0.0
    %699 = vmatpush1.msra.mxu0 0.0
    %700 = vmatprep.mubr.f32.mxu0 0.0
    %701 = vmatmul.mubr.f32.gmra.mrb[0].mxu0 %v618
    %v702 = vpop.f32.mrb[0].mxu0
    %v703 = vadd.f32 0.1, %v702
    %v704 = vpop.f32.mrb[0].mxu0
    %705 = vdwg.mxu0
    %v706 = vand.u32 2147483647, %v703
    %vm707 = vcmp.le.f32.partialorder %v706, 0.7853982
    %vm708 = vcmp.lt.s32.totalorder %v703, 0
    %v709 = vand.u32 %v703, 2139095040
    %v710 = vshrl.u32 %v709, 23
    %v711 = vsub.s32 %v710, 127
    %v712 = vand.u32 2147483647, %v703
    %v713 = vand.u32 %v712, 8388607
    %v714 = vor.u32 %v713, 8388608
    %v715 = vsub.s32 0, %v714
    %v716 = vadd.s32 %v711, 1
    %vm717 = vcmp.gt.s32.totalorder %v716, 0
    %v718 = vsel %vm717, %v716, 0
    %v719 = vshrl.u32 %v718, 5
    %v720 = vand.u32 %v718, 31
    %v721 = vsub.s32 32, %v720
    %v722 = vshrl.u32 683565275, %v721
    %v723 = vshll.u32 683565275, %v720
    %v724 = vshrl.u32 2475754826, %v721
    %v725 = vor.u32 %v723, %v724
    %v726 = vshll.u32 2475754826, %v720
    %v727 = vshrl.u32 2131351028, %v721
    %v728 = vor.u32 %v726, %v727
    %v729 = vshll.u32 2131351028, %v720
    %v730 = vshrl.u32 2102212464, %v721
    %v731 = vor.u32 %v729, %v730
    %v732 = vshll.u32 2102212464, %v720
    %v733 = vshrl.u32 920167782, %v721
    %v734 = vor.u32 %v732, %v733
    %v735 = vshll.u32 920167782, %v720
    %v736 = vshrl.u32 1326507024, %v721
    %v737 = vor.u32 %v735, %v736
    %vm738 = vcmp.lt.s32.totalorder %v719, 1
    %vm739 = vcmp.lt.s32.totalorder %v719, 2
    %vm740 = vcmp.lt.s32.totalorder %v719, 3
    %vm741 = vcmp.lt.s32.totalorder %v719, 4
    %v742 = vsel %vm738, %v722, %v725
    %v743 = vsel %vm741, %v731, 2102212464
    %v744 = vsel %vm740, %v728, %v743
    %v745 = vsel %vm739, %v742, %v744
    %v746 = vsel %vm738, %v725, %v728
    %v747 = vsel %vm741, %v734, 920167782
    %v748 = vsel %vm740, %v731, %v747
    %v749 = vsel %vm739, %v746, %v748
    %v750 = vsel %vm738, %v728, %v731
    %v751 = vsel %vm741, %v737, 1326507024
    %v752 = vsel %vm740, %v734, %v751
    %v753 = vsel %vm739, %v750, %v752
    %v754 = vshll.u32 %v714, 8
    %v755 = vmul.u32.u64.compose %v754, %v753
    %v756 = vextract.low.u32 %v755
    %v757 = vextract.high.u32 %v755
    %v758 = vmul.u32.u64.compose %v754, %v749
    %v759 = vextract.low.u32 %v758
    %v760 = vextract.high.u32 %v758
    %v761 = vmul.u32 %v754, %v745
    %v762 = vadd.s32 %v757, %v759
    %vm763 = vc.u32 %v757, %v759
    %v764 = vadd.s32 %v760, 1
    %v765 = vsel %vm763, %v764, %v760
    %v766 = vadd.s32 %v761, %v765
    %v767 = vadd.s32 %v766, 536870912
    %v768 = vshrl.u32 %v767, 30
    %v769 = vshll.u32 %v768, 30
    %v770 = vsub.s32 %v766, %v769
    %vm771 = vcmp.lt.s32.totalorder %v770, 0
    %v772 = vsub.s32 0, %v770
    %v773 = vsel %vm771, %v772, %v770
    %v774 = vclz %v773
    %v775 = vsub.s32 %v774, 2
    %vm776 = vcmp.gt.s32.totalorder 0, %v775
    %v777 = vsel %vm776, 0, %v775
    %v778 = vsub.s32 32, %v777
    %v779 = vshll.u32 %v770, %v777
    %v780 = vshrl.u32 %v762, %v778
    %v781 = vor.u32 %v779, %v780
    %v782 = vsub.s32 4294967266, %v777
    %v783 = vadd.s32 %v782, 127
    %v784 = vshll.u32 %v783, 23
    %v785 = vor.u32 4788187, %v784
    %v786 = vand.u32 2147483647, %v785
    %v788 = vcvt.s32.f32 %v781
    %v789 = vmul.f32 %v788, %v786
    %v790 = vxor.u32 %v789, 2147483648
    %v791 = vsel %vm708, %v790, %v789
    %v792 = vsub.s32 4, %v768
    %v793 = vsel %vm708, %v792, %v768
    %v794 = vsel %vm707, %v703, %v791
    %v795 = vsel %vm707, 0, %v793
    %v796 = vcosq.f32.pop %v794
    %v797 = vsinq.f32.pop %v794
    %vm798 = vweird.f32 %v703
    %v799 = vadd.s32 %v795, 3
    %v800 = vand.u32 %v799, 3
    %vm801 = vcmp.lt.s32.totalorder %v800, 2
    %vm802 = vcmp.eq.s32.totalorder %v800, 0
    %v803 = vxor.u32 %v797, 2147483648
    %v804 = vsel %vm802, %v796, %v803
    %vm805 = vcmp.eq.s32.totalorder %v800, 2
    %v806 = vxor.u32 %v796, 2147483648
    %v807 = vsel %vm805, %v806, %v797
    %v808 = vsel %vm801, %v804, %v807
    %v809 = vsel %vm798, nan, %v808
    %vm810 = vcmp.gt.f32.partialorder %v809, 0.01
    %v811 = vsel %vm810, 1, 0
    %v812 = vcvt.s32.f32 %v811
    %vm813 = vcmp.lt.f32.partialorder %v809, -0.01
    %v814 = vsel %vm813, 1, 0
    %v815 = vcvt.s32.f32 %v814
    %v816 = vsub.f32 %v812, %v815
    %v817 = vld [vmem:[%s3] sm:$0xff]
    %v818 = vld [vmem:[%s3 + $0x8] sm:$0xff]
    %v819 = vld [vmem:[%s3 + $0x10] sm:$0xff]
    %v820 = vld [vmem:[%s3 + $0x18] sm:$0xff]
    %v821 = vld [vmem:[%s3 + $0x20] sm:$0xff]
    %v822 = vld [vmem:[%s3 + $0x28] sm:$0xff]
    %v823 = vld [vmem:[%s3 + $0x30] sm:$0xff]
    %v824 = vld [vmem:[%s3 + $0x38] sm:$0xff]
    %v825 = vld [vmem:[%s3 + $0x40] sm:$0xff]
    %v826 = vld [vmem:[%s3 + $0x48] sm:$0xff]
    %v827 = vld [vmem:[%s3 + $0x50] sm:$0xff]
    %v828 = vld [vmem:[%s3 + $0x58] sm:$0xff]
    %v829 = vld [vmem:[%s3 + $0x60] sm:$0xff]
    %v830 = vld [vmem:[%s3 + $0x68] sm:$0xff]
    %v831 = vld [vmem:[%s3 + $0x70] sm:$0xff]
    %v832 = vld [vmem:[%s3 + $0x78] sm:$0xff]
    %833 = vmatprep.subr.mxu0 0.0
    %834 = vmatpush1.msra.mxu0 %v817
    %835 = vmatprep.subr.mxu0 0.0
    %836 = vmatpush1.msra.mxu0 %v818
    %837 = vmatprep.subr.mxu0 0.0
    %838 = vmatpush1.msra.mxu0 %v819
    %839 = vmatprep.subr.mxu0 0.0
    %840 = vmatpush1.msra.mxu0 %v820
    %841 = vmatprep.subr.mxu0 0.0
    %842 = vmatpush1.msra.mxu0 %v821
    %843 = vmatprep.subr.mxu0 0.0
    %844 = vmatpush1.msra.mxu0 %v822
    %845 = vmatprep.subr.mxu0 0.0
    %846 = vmatpush1.msra.mxu0 %v823
    %847 = vmatprep.subr.mxu0 0.0
    %848 = vmatpush1.msra.mxu0 %v824
    %849 = vmatprep.subr.mxu0 0.0
    %850 = vmatpush1.msra.mxu0 %v825
    %851 = vmatprep.subr.mxu0 0.0
    %852 = vmatpush1.msra.mxu0 %v826
    %853 = vmatprep.subr.mxu0 0.0
    %854 = vmatpush1.msra.mxu0 %v827
    %855 = vmatprep.subr.mxu0 0.0
    %856 = vmatpush1.msra.mxu0 %v828
    %857 = vmatprep.subr.mxu0 0.0
    %858 = vmatpush1.msra.mxu0 %v829
    %859 = vmatprep.subr.mxu0 0.0
    %860 = vmatpush1.msra.mxu0 %v830
    %861 = vmatprep.subr.mxu0 0.0
    %862 = vmatpush1.msra.mxu0 %v831
    %863 = vmatprep.subr.mxu0 0.0
    %864 = vmatpush1.msra.mxu0 %v832
    %865 = vmatprep.subr.mxu0 0.0
    %866 = vmatpush1.msra.mxu0 0.0
    %867 = vmatprep.subr.mxu0 0.0
    %868 = vmatpush1.msra.mxu0 0.0
    %869 = vmatprep.subr.mxu0 0.0
    %870 = vmatpush1.msra.mxu0 0.0
    %871 = vmatprep.subr.mxu0 0.0
    %872 = vmatpush1.msra.mxu0 0.0
    %873 = vmatprep.subr.mxu0 0.0
    %874 = vmatpush1.msra.mxu0 0.0
    %875 = vmatprep.subr.mxu0 0.0
    %876 = vmatpush1.msra.mxu0 0.0
    %877 = vmatprep.subr.mxu0 0.0
    %878 = vmatpush1.msra.mxu0 0.0
    %879 = vmatprep.subr.mxu0 0.0
    %880 = vmatpush1.msra.mxu0 0.0
    %881 = vmatprep.subr.mxu0 0.0
    %882 = vmatpush1.msra.mxu0 0.0
    %883 = vmatprep.subr.mxu0 0.0
    %884 = vmatpush1.msra.mxu0 0.0
    %885 = vmatprep.subr.mxu0 0.0
    %886 = vmatpush1.msra.mxu0 0.0
    %887 = vmatprep.subr.mxu0 0.0
    %888 = vmatpush1.msra.mxu0 0.0
    %889 = vmatprep.subr.mxu0 0.0
    %890 = vmatpush1.msra.mxu0 0.0
    %891 = vmatprep.subr.mxu0 0.0
    %892 = vmatpush1.msra.mxu0 0.0
    %893 = vmatprep.subr.mxu0 0.0
    %894 = vmatpush1.msra.mxu0 0.0
    %895 = vmatprep.subr.mxu0 0.0
    %896 = vmatpush1.msra.mxu0 0.0
    %897 = vmatprep.mubr.f32.mxu0 0.0
    %898 = vmatmul.mubr.f32.gmra.mrb[0].mxu0 %v816
    %v899 = vpop.f32.mrb[0].mxu0
    %v900 = vadd.f32 0.0, %v899
    %v901 = vpop.f32.mrb[0].mxu0
    %902 = vdwg.mxu0
    %903 = vst.msk [vmem:[%s4] sm:$0xff] %vm33, %v900
    // Predicated region
    $region22: #{tpu_custom_call.1} parent=1 // pred_check
      _
    $region23: #{tpu_custom_call.1} parent=1 // pred_check_branch
      %905 = sbr.rel (0) target = $region25
    $region24: #{tpu_custom_call.1} parent=1 // pred_region
      _
    $region25: #{tpu_custom_call.1} parent=1 // pred_fallthru
      _
    // Predicated region
    $region26: #{tpu_custom_call.1} parent=1 // pred_check
      _
    $region27: #{tpu_custom_call.1} parent=1 // pred_check_branch
      %907 = sbr.rel (0) target = $region29
    $region28: #{tpu_custom_call.1} parent=1 // pred_region
      _
    $region29: #{tpu_custom_call.1} parent=1 // pred_fallthru
      _
    %908 = vsyncpa [#allocation3], 1

</llo_original>
